<compile_context>
chip_gen: v5e
topology: v5e:2x2
jax: 0.10.0
libtpu: 0.0.40
codegen_flags: <defaults>
</compile_context>

<pallas_src>
import math

import jax
import jax.numpy as jnp
from jax import lax
from jax.experimental import pallas as pl
from jax.experimental.pallas import tpu as pltpu

# ----------------------------- model parameters (deterministic) -----------------------------
U_REST      = -70.0
THRESH_RH   = -55.0
THRESH_R    = -55.0
R_PARAM     = 1.0
C_PARAM     = 10.0
TAU_M       = R_PARAM * C_PARAM      # 10.0
TAU_W       = 1.0
A_PARAM     = 1.0
B_PARAM     = 1.0
DELTA_T     = 10.0
DT          = 1.0
TAU_S       = 10.0
TRACE_SCALE = 1.0

# --------------------- compile-time folded constants (no in-kernel div/exp for these) -------
DT_OVER_TAU_W = DT / TAU_W
DT_OVER_TAU_M = DT / TAU_M
INV_DELTA_T   = 1.0 / DELTA_T
TRACE_DECAY   = math.exp(-DT / TAU_S)

# W update: W_new = W_KEEP*W + W_U_GAIN*u + W_NS_GAIN*ns + W_BIAS
W_KEEP    = 1.0 - DT_OVER_TAU_W                 # 0.0 with these params
W_U_GAIN  = DT_OVER_TAU_W * A_PARAM             # 1.0
W_NS_GAIN = DT * B_PARAM                        # 1.0   (dt/tau_w * b * tau_w)
W_BIAS    = -DT_OVER_TAU_W * A_PARAM * U_REST   # 70.0

# u update: u_new = U_KEEP*u + U_BIAS + EXP_GAIN*exp((u-th_rh)/Δ) + RW_GAIN*(x - W_new)
U_KEEP   = 1.0 - DT_OVER_TAU_M                  # 0.9
U_BIAS   = DT_OVER_TAU_M * U_REST               # -7.0
EXP_GAIN = DT_OVER_TAU_M * DELTA_T              # 1.0
RW_GAIN  = DT_OVER_TAU_M * R_PARAM              # 0.1

# Population topology (the module's `shape`): last dim maps to the 128-lane axis.
P_ROWS, P_LANES = 16, 128


# --------------------------- trace-time constant-folding helpers ---------------------------
def _scale(coef, x):
    if coef == 1.0:
        return x
    if coef == -1.0:
        return -x
    return coef * x


def _axpy(y, coef, x):
    """y + coef*x, folding coef in {0, 1, -1} away at trace time."""
    if coef == 0.0:
        return y
    if coef == 1.0:
        return y + x
    if coef == -1.0:
        return y - x
    return y + coef * x


def _largest_divisor_leq(n, cap):
    d = max(1, min(n, cap))
    while n % d:
        d -= 1
    return d


# --------------------------------- one AELIF simulation step -------------------------------
def _aelif_step(x, u, W, ns, trc):
    """Single dt step; shared by the Pallas kernel and the pure-JAX reference."""
    # compute_potential -- adaptation current (NEW W feeds the u update):
    W = _axpy(_axpy(_scale(W_U_GAIN, u) + W_BIAS, W_NS_GAIN, ns), W_KEEP, W)
    # compute_potential -- membrane potential (constants pre-folded; see header):
    e = jnp.exp((u - THRESH_RH) * INV_DELTA_T)   # unclamped, matches PyTorch reference
    u = _axpy(_axpy(_scale(U_KEEP, u) + U_BIAS, RW_GAIN, x - W), EXP_GAIN, e)
    # compute_spike:
    s = u >= THRESH_R
    s_f = s.astype(jnp.float32)
    ns = ns + s_f
    u = jnp.where(s, jnp.float32(U_REST), u)
    # NeuralPopulation.forward: additive spike-trace update:
    trc = _axpy(trc * TRACE_DECAY, TRACE_SCALE, s_f)
    return u, W, ns, trc, s_f


# ----------------------------------------- kernel ------------------------------------------
def _aelif_kernel(tr_in_ref, state_in_ref,      # inputs:  (TB,R,L) traces chunk, (4,R,L) state
                  state_out_ref, s_out_ref,     # outputs: (4,R,L) final state, (R,L) final s
                  state_sc):                    # scratch: (4,R,L) VMEM-resident state
    c = pl.program_id(0)
    n_chunks = pl.num_programs(0)
    tb = tr_in_ref.shape[0]                     # timesteps in this chunk (static)

    # Load initial state into VMEM scratch once (single HBM read of the state).
    @pl.when(c == 0)
    def _init():
        state_sc[...] = state_in_ref[...]

    u   = state_sc[0]
    W   = state_sc[1]
    ns  = state_sc[2]
    trc = state_sc[3]
    s_f = jnp.zeros_like(u)

    # In-kernel time loop: state lives in vregs across steps; inner unroll hides EUP latency.
    unroll = _largest_divisor_leq(tb, 8)
    n_outer = tb // unroll

    def body(i, carry):
        u, W, ns, trc, s_f = carry
        base = i * unroll
        for j in range(unroll):                 # static unroll
            x = tr_in_ref[base + j]             # (R, L) input spike trace for this timestep
            u, W, ns, trc, s_f = _aelif_step(x, u, W, ns, trc)
        return (u, W, ns, trc, s_f)

    u, W, ns, trc, s_f = lax.fori_loop(0, n_outer, body, (u, W, ns, trc, s_f))

    # Carry state to the next chunk (one set of VMEM stores per chunk, not per step).
    state_sc[0] = u
    state_sc[1] = W
    state_sc[2] = ns
    state_sc[3] = trc

    # Single HBM write-back of the final state and the last step's spikes.
    @pl.when(c == n_chunks - 1)
    def _finalize():
        state_out_ref[0] = u
        state_out_ref[1] = W
        state_out_ref[2] = ns
        state_out_ref[3] = trc
        s_out_ref[...] = s_f                    # 0/1 float32 (module's bool `s`)


# ---------------------------------------- wrapper ------------------------------------------
def aelif_run(traces_seq, state, *, tb_max=512):
    """Run T fused AELIF simulation steps.

    traces_seq : (T, ROWS, LANES) float32 input spike traces, one slice per dt step.
    state      : (4, ROWS, LANES) float32 stacked state [u, W, num_spikes, traces].
    Returns (final_state (4,R,L), final_spikes (R,L) as 0/1 float32).
    """
    n_steps, rows, lanes = traces_seq.shape
    # Chunk length: largest divisor of T that is <= tb_max (keeps trip counts static and
    # the double-buffered input chunk inside scoped-VMEM defaults on v5e/v6e/v7x).
    tb = _largest_divisor_leq(n_steps, tb_max)
    n_chunks = n_steps // tb

    tr_spec    = pl.BlockSpec((tb, rows, lanes), lambda c: (c, 0, 0))   # one time chunk / step
    state_spec = pl.BlockSpec((4, rows, lanes), lambda c: (0, 0, 0))    # whole state, resident
    s_spec     = pl.BlockSpec((rows, lanes), lambda c: (0, 0))

    out_shapes = (
        jax.ShapeDtypeStruct((4, rows, lanes), jnp.float32),   # [u, W, num_spikes, traces]
        jax.ShapeDtypeStruct((rows, lanes), jnp.float32),      # s (0/1 f32)
    )

    return pl.pallas_call(
        _aelif_kernel,
        out_shape=out_shapes,
        grid=(n_chunks,),
        in_specs=[tr_spec, state_spec],
        out_specs=(state_spec, s_spec),
        scratch_shapes=[pltpu.VMEM((4, rows, lanes), jnp.float32)],
        input_output_aliases={1: 0},            # stacked state updated in place
        compiler_params=pltpu.CompilerParams(dimension_semantics=("arbitrary",)),
    )(traces_seq, state)


# jit with state-buffer donation so the aliasing actually updates in place.
aelif_run_jit = jax.jit(aelif_run, donate_argnums=(1,), static_argnames=("tb_max",))


if __name__ == "__main__":
    key = jax.random.PRNGKey(0)

    T = 16  # simulation steps (small demo; tb_max=8 below exercises the multi-chunk path)

    # Initial state (matches __init__ / reset_state_variables): u = u_rest, W = 0,
    # num_spikes = 0, traces = 0.
    def init_state():
        u0 = jnp.full((P_ROWS, P_LANES), U_REST, dtype=jnp.float32)
        z = jnp.zeros((P_ROWS, P_LANES), dtype=jnp.float32)
        return u0, z, z, z

    # Deterministic input spike traces (input-current surrogate), one per step.
    traces_seq = 30.0 * jax.random.uniform(key, (T, P_ROWS, P_LANES), dtype=jnp.float32)

    # ---- Pallas fused-T-step kernel (stacked state donated / aliased) ----
    u0, W0, ns0, trc0 = init_state()
    state0 = jnp.stack([u0, W0, ns0, trc0])     # (4, ROWS, LANES)
    state_f, s_f = aelif_run_jit(traces_seq, state0, tb_max=8)   # 2 chunks of 8 steps
    jax.block_until_ready((state_f, s_f))

    # ---- Pure-JAX reference: T sequential steps with the same step math ----
    ru, rw, rns, rtrc = init_state()
    rs = jnp.zeros((P_ROWS, P_LANES), dtype=jnp.float32)
    for t in range(T):
        ru, rw, rns, rtrc, rs = _aelif_step(traces_seq[t], ru, rw, rns, rtrc)

    assert jnp.allclose(state_f[0], ru, atol=1e-4, rtol=1e-5)    # u
    assert jnp.allclose(state_f[1], rw, atol=1e-4, rtol=1e-5)    # W
    assert jnp.array_equal(state_f[2], rns)                      # num_spikes
    assert jnp.allclose(state_f[3], rtrc, atol=1e-5)             # traces
    assert jnp.array_equal(s_f, rs)                              # last-step spikes

    print("KERNEL_OK")
</pallas_src>

<mosaic_0001>
module attributes {stable_mosaic.version = 11 : i64} {
  func.func @_aelif_kernel(%arg0: i32, %arg1: memref<8x16x128xf32, #tpu.memory_space<vmem>>, %arg2: memref<4x16x128xf32, #tpu.memory_space<vmem>>, %arg3: memref<4x16x128xf32, #tpu.memory_space<vmem>>, %arg4: memref<16x128xf32, #tpu.memory_space<vmem>>, %arg5: memref<4x16x128xf32, #tpu.memory_space<vmem>>) attributes {dimension_semantics = [#tpu.dimension_semantics<arbitrary>], iteration_bounds = array<i64: 2>, scalar_prefetch = 0 : i64, scratch_operands = 1 : i64, tpu.core_type = #tpu.core_type<tc>, window_params = [{transform_indices = @transform_0, window_bounds = array<i64: 8, 16, 128>}, {pipeline_mode = #tpu.pipeline_mode<synchronous>, transform_indices = @transform_1, window_bounds = array<i64: 4, 16, 128>}, {pipeline_mode = #tpu.pipeline_mode<synchronous>, transform_indices = @transform_2, window_bounds = array<i64: 4, 16, 128>}, {pipeline_mode = #tpu.pipeline_mode<synchronous>, transform_indices = @transform_3, window_bounds = array<i64: 16, 128>}]} {
    %c0_i32 = arith.constant 0 : i32
    %0 = arith.cmpi eq, %arg0, %c0_i32 : i32
    %1 = arith.extui %0 : i1 to i32
    %c0_i32_0 = arith.constant 0 : i32
    %2 = arith.cmpi ne, %1, %c0_i32_0 : i32
    scf.if %2 {
      %c0_114 = arith.constant 0 : index
      %c0_115 = arith.constant 0 : index
      %c0_116 = arith.constant 0 : index
      %276 = vector.load %arg2[%c0_114, %c0_115, %c0_116] : memref<4x16x128xf32, #tpu.memory_space<vmem>>, vector<4x16x128xf32>
      %c0_117 = arith.constant 0 : index
      %c0_118 = arith.constant 0 : index
      %c0_119 = arith.constant 0 : index
      %277 = vector.load %arg5[%c0_117, %c0_118, %c0_119] : memref<4x16x128xf32, #tpu.memory_space<vmem>>, vector<4x16x128xf32>
      tpu.vector_store %arg5[%c0_117, %c0_118, %c0_119], %276 {strides = array<i32>} : memref<4x16x128xf32, #tpu.memory_space<vmem>>, vector<4x16x128xf32>,
    } else {
    }
    %c0 = arith.constant 0 : index
    %c0_1 = arith.constant 0 : index
    %c0_2 = arith.constant 0 : index
    %3 = vector.load %arg5[%c0, %c0_1, %c0_2] : memref<4x16x128xf32, #tpu.memory_space<vmem>>, vector<1x16x128xf32>
    %4 = vector.shape_cast %3 : vector<1x16x128xf32> to vector<16x128xf32>
    %c1 = arith.constant 1 : index
    %c0_3 = arith.constant 0 : index
    %c0_4 = arith.constant 0 : index
    %5 = vector.load %arg5[%c1, %c0_3, %c0_4] : memref<4x16x128xf32, #tpu.memory_space<vmem>>, vector<1x16x128xf32>
    %6 = vector.shape_cast %5 : vector<1x16x128xf32> to vector<16x128xf32>
    %c2 = arith.constant 2 : index
    %c0_5 = arith.constant 0 : index
    %c0_6 = arith.constant 0 : index
    %7 = vector.load %arg5[%c2, %c0_5, %c0_6] : memref<4x16x128xf32, #tpu.memory_space<vmem>>, vector<1x16x128xf32>
    %8 = vector.shape_cast %7 : vector<1x16x128xf32> to vector<16x128xf32>
    %c3 = arith.constant 3 : index
    %c0_7 = arith.constant 0 : index
    %c0_8 = arith.constant 0 : index
    %9 = vector.load %arg5[%c3, %c0_7, %c0_8] : memref<4x16x128xf32, #tpu.memory_space<vmem>>, vector<1x16x128xf32>
    %10 = vector.shape_cast %9 : vector<1x16x128xf32> to vector<16x128xf32>
    %cst = arith.constant 0.000000e+00 : f32
    %11 = vector.broadcast %cst : f32 to vector<16x128xf32>
    %c0_i32_9 = arith.constant 0 : i32
    %c8_i32 = arith.constant 8 : i32
    %12 = arith.muli %c0_i32_9, %c8_i32 : i32
    %c0_i32_10 = arith.constant 0 : i32
    %13 = arith.addi %12, %c0_i32_10 : i32
    %14 = arith.index_cast %13 : i32 to index
    %c0_11 = arith.constant 0 : index
    %c0_12 = arith.constant 0 : index
    %15 = vector.load %arg1[%14, %c0_11, %c0_12] : memref<8x16x128xf32, #tpu.memory_space<vmem>>, vector<1x16x128xf32>
    %16 = vector.shape_cast %15 : vector<1x16x128xf32> to vector<16x128xf32>
    %cst_13 = arith.constant 7.000000e+01 : f32
    %17 = vector.broadcast %cst_13 : f32 to vector<16x128xf32>
    %18 = arith.addf %4, %17 : vector<16x128xf32>
    %19 = arith.addf %18, %8 : vector<16x128xf32>
    %cst_14 = arith.constant -5.500000e+01 : f32
    %20 = vector.broadcast %cst_14 : f32 to vector<16x128xf32>
    %21 = arith.subf %4, %20 : vector<16x128xf32>
    %cst_15 = arith.constant 1.000000e-01 : f32
    %22 = vector.broadcast %cst_15 : f32 to vector<16x128xf32>
    %23 = arith.mulf %21, %22 : vector<16x128xf32>
    %24 = math.exp %23 : vector<16x128xf32>
    %cst_16 = arith.constant 0.899999976 : f32
    %25 = vector.broadcast %cst_16 : f32 to vector<16x128xf32>
    %26 = arith.mulf %25, %4 : vector<16x128xf32>
    %cst_17 = arith.constant -7.000000e+00 : f32
    %27 = vector.broadcast %cst_17 : f32 to vector<16x128xf32>
    %28 = arith.addf %26, %27 : vector<16x128xf32>
    %29 = arith.subf %16, %19 : vector<16x128xf32>
    %cst_18 = arith.constant 1.000000e-01 : f32
    %30 = vector.broadcast %cst_18 : f32 to vector<16x128xf32>
    %31 = arith.mulf %30, %29 : vector<16x128xf32>
    %32 = arith.addf %28, %31 : vector<16x128xf32>
    %33 = arith.addf %32, %24 : vector<16x128xf32>
    %cst_19 = arith.constant -5.500000e+01 : f32
    %34 = vector.broadcast %cst_19 : f32 to vector<16x128xf32>
    %35 = arith.cmpf oge, %33, %34 : vector<16x128xf32>
    %36 = arith.extui %35 : vector<16x128xi1> to vector<16x128xi32>
    %37 = arith.sitofp %36 : vector<16x128xi32> to vector<16x128xf32>
    %38 = arith.addf %8, %37 : vector<16x128xf32>
    %cst_20 = arith.constant -7.000000e+01 : f32
    %39 = vector.broadcast %cst_20 : f32 to vector<16x128xf32>
    %40 = arith.select %35, %39, %33 : vector<16x128xi1>, vector<16x128xf32>
    %cst_21 = arith.constant 0.904837429 : f32
    %41 = vector.broadcast %cst_21 : f32 to vector<16x128xf32>
    %42 = arith.mulf %10, %41 : vector<16x128xf32>
    %43 = arith.addf %42, %37 : vector<16x128xf32>
    %c1_i32 = arith.constant 1 : i32
    %44 = arith.addi %12, %c1_i32 : i32
    %45 = arith.index_cast %44 : i32 to index
    %c0_22 = arith.constant 0 : index
    %c0_23 = arith.constant 0 : index
    %46 = vector.load %arg1[%45, %c0_22, %c0_23] : memref<8x16x128xf32, #tpu.memory_space<vmem>>, vector<1x16x128xf32>
    %47 = vector.shape_cast %46 : vector<1x16x128xf32> to vector<16x128xf32>
    %cst_24 = arith.constant 7.000000e+01 : f32
    %48 = vector.broadcast %cst_24 : f32 to vector<16x128xf32>
    %49 = arith.addf %40, %48 : vector<16x128xf32>
    %50 = arith.addf %49, %38 : vector<16x128xf32>
    %cst_25 = arith.constant -5.500000e+01 : f32
    %51 = vector.broadcast %cst_25 : f32 to vector<16x128xf32>
    %52 = arith.subf %40, %51 : vector<16x128xf32>
    %cst_26 = arith.constant 1.000000e-01 : f32
    %53 = vector.broadcast %cst_26 : f32 to vector<16x128xf32>
    %54 = arith.mulf %52, %53 : vector<16x128xf32>
    %55 = math.exp %54 : vector<16x128xf32>
    %cst_27 = arith.constant 0.899999976 : f32
    %56 = vector.broadcast %cst_27 : f32 to vector<16x128xf32>
    %57 = arith.mulf %56, %40 : vector<16x128xf32>
    %cst_28 = arith.constant -7.000000e+00 : f32
    %58 = vector.broadcast %cst_28 : f32 to vector<16x128xf32>
    %59 = arith.addf %57, %58 : vector<16x128xf32>
    %60 = arith.subf %47, %50 : vector<16x128xf32>
    %cst_29 = arith.constant 1.000000e-01 : f32
    %61 = vector.broadcast %cst_29 : f32 to vector<16x128xf32>
    %62 = arith.mulf %61, %60 : vector<16x128xf32>
    %63 = arith.addf %59, %62 : vector<16x128xf32>
    %64 = arith.addf %63, %55 : vector<16x128xf32>
    %cst_30 = arith.constant -5.500000e+01 : f32
    %65 = vector.broadcast %cst_30 : f32 to vector<16x128xf32>
    %66 = arith.cmpf oge, %64, %65 : vector<16x128xf32>
    %67 = arith.extui %66 : vector<16x128xi1> to vector<16x128xi32>
    %68 = arith.sitofp %67 : vector<16x128xi32> to vector<16x128xf32>
    %69 = arith.addf %38, %68 : vector<16x128xf32>
    %cst_31 = arith.constant -7.000000e+01 : f32
    %70 = vector.broadcast %cst_31 : f32 to vector<16x128xf32>
    %71 = arith.select %66, %70, %64 : vector<16x128xi1>, vector<16x128xf32>
    %cst_32 = arith.constant 0.904837429 : f32
    %72 = vector.broadcast %cst_32 : f32 to vector<16x128xf32>
    %73 = arith.mulf %43, %72 : vector<16x128xf32>
    %74 = arith.addf %73, %68 : vector<16x128xf32>
    %c2_i32 = arith.constant 2 : i32
    %75 = arith.addi %12, %c2_i32 : i32
    %76 = arith.index_cast %75 : i32 to index
    %c0_33 = arith.constant 0 : index
    %c0_34 = arith.constant 0 : index
    %77 = vector.load %arg1[%76, %c0_33, %c0_34] : memref<8x16x128xf32, #tpu.memory_space<vmem>>, vector<1x16x128xf32>
    %78 = vector.shape_cast %77 : vector<1x16x128xf32> to vector<16x128xf32>
    %cst_35 = arith.constant 7.000000e+01 : f32
    %79 = vector.broadcast %cst_35 : f32 to vector<16x128xf32>
    %80 = arith.addf %71, %79 : vector<16x128xf32>
    %81 = arith.addf %80, %69 : vector<16x128xf32>
    %cst_36 = arith.constant -5.500000e+01 : f32
    %82 = vector.broadcast %cst_36 : f32 to vector<16x128xf32>
    %83 = arith.subf %71, %82 : vector<16x128xf32>
    %cst_37 = arith.constant 1.000000e-01 : f32
    %84 = vector.broadcast %cst_37 : f32 to vector<16x128xf32>
    %85 = arith.mulf %83, %84 : vector<16x128xf32>
    %86 = math.exp %85 : vector<16x128xf32>
    %cst_38 = arith.constant 0.899999976 : f32
    %87 = vector.broadcast %cst_38 : f32 to vector<16x128xf32>
    %88 = arith.mulf %87, %71 : vector<16x128xf32>
    %cst_39 = arith.constant -7.000000e+00 : f32
    %89 = vector.broadcast %cst_39 : f32 to vector<16x128xf32>
    %90 = arith.addf %88, %89 : vector<16x128xf32>
    %91 = arith.subf %78, %81 : vector<16x128xf32>
    %cst_40 = arith.constant 1.000000e-01 : f32
    %92 = vector.broadcast %cst_40 : f32 to vector<16x128xf32>
    %93 = arith.mulf %92, %91 : vector<16x128xf32>
    %94 = arith.addf %90, %93 : vector<16x128xf32>
    %95 = arith.addf %94, %86 : vector<16x128xf32>
    %cst_41 = arith.constant -5.500000e+01 : f32
    %96 = vector.broadcast %cst_41 : f32 to vector<16x128xf32>
    %97 = arith.cmpf oge, %95, %96 : vector<16x128xf32>
    %98 = arith.extui %97 : vector<16x128xi1> to vector<16x128xi32>
    %99 = arith.sitofp %98 : vector<16x128xi32> to vector<16x128xf32>
    %100 = arith.addf %69, %99 : vector<16x128xf32>
    %cst_42 = arith.constant -7.000000e+01 : f32
    %101 = vector.broadcast %cst_42 : f32 to vector<16x128xf32>
    %102 = arith.select %97, %101, %95 : vector<16x128xi1>, vector<16x128xf32>
    %cst_43 = arith.constant 0.904837429 : f32
    %103 = vector.broadcast %cst_43 : f32 to vector<16x128xf32>
    %104 = arith.mulf %74, %103 : vector<16x128xf32>
    %105 = arith.addf %104, %99 : vector<16x128xf32>
    %c3_i32 = arith.constant 3 : i32
    %106 = arith.addi %12, %c3_i32 : i32
    %107 = arith.index_cast %106 : i32 to index
    %c0_44 = arith.constant 0 : index
    %c0_45 = arith.constant 0 : index
    %108 = vector.load %arg1[%107, %c0_44, %c0_45] : memref<8x16x128xf32, #tpu.memory_space<vmem>>, vector<1x16x128xf32>
    %109 = vector.shape_cast %108 : vector<1x16x128xf32> to vector<16x128xf32>
    %cst_46 = arith.constant 7.000000e+01 : f32
    %110 = vector.broadcast %cst_46 : f32 to vector<16x128xf32>
    %111 = arith.addf %102, %110 : vector<16x128xf32>
    %112 = arith.addf %111, %100 : vector<16x128xf32>
    %cst_47 = arith.constant -5.500000e+01 : f32
    %113 = vector.broadcast %cst_47 : f32 to vector<16x128xf32>
    %114 = arith.subf %102, %113 : vector<16x128xf32>
    %cst_48 = arith.constant 1.000000e-01 : f32
    %115 = vector.broadcast %cst_48 : f32 to vector<16x128xf32>
    %116 = arith.mulf %114, %115 : vector<16x128xf32>
    %117 = math.exp %116 : vector<16x128xf32>
    %cst_49 = arith.constant 0.899999976 : f32
    %118 = vector.broadcast %cst_49 : f32 to vector<16x128xf32>
    %119 = arith.mulf %118, %102 : vector<16x128xf32>
    %cst_50 = arith.constant -7.000000e+00 : f32
    %120 = vector.broadcast %cst_50 : f32 to vector<16x128xf32>
    %121 = arith.addf %119, %120 : vector<16x128xf32>
    %122 = arith.subf %109, %112 : vector<16x128xf32>
    %cst_51 = arith.constant 1.000000e-01 : f32
    %123 = vector.broadcast %cst_51 : f32 to vector<16x128xf32>
    %124 = arith.mulf %123, %122 : vector<16x128xf32>
    %125 = arith.addf %121, %124 : vector<16x128xf32>
    %126 = arith.addf %125, %117 : vector<16x128xf32>
    %cst_52 = arith.constant -5.500000e+01 : f32
    %127 = vector.broadcast %cst_52 : f32 to vector<16x128xf32>
    %128 = arith.cmpf oge, %126, %127 : vector<16x128xf32>
    %129 = arith.extui %128 : vector<16x128xi1> to vector<16x128xi32>
    %130 = arith.sitofp %129 : vector<16x128xi32> to vector<16x128xf32>
    %131 = arith.addf %100, %130 : vector<16x128xf32>
    %cst_53 = arith.constant -7.000000e+01 : f32
    %132 = vector.broadcast %cst_53 : f32 to vector<16x128xf32>
    %133 = arith.select %128, %132, %126 : vector<16x128xi1>, vector<16x128xf32>
    %cst_54 = arith.constant 0.904837429 : f32
    %134 = vector.broadcast %cst_54 : f32 to vector<16x128xf32>
    %135 = arith.mulf %105, %134 : vector<16x128xf32>
    %136 = arith.addf %135, %130 : vector<16x128xf32>
    %c4_i32 = arith.constant 4 : i32
    %137 = arith.addi %12, %c4_i32 : i32
    %138 = arith.index_cast %137 : i32 to index
    %c0_55 = arith.constant 0 : index
    %c0_56 = arith.constant 0 : index
    %139 = vector.load %arg1[%138, %c0_55, %c0_56] : memref<8x16x128xf32, #tpu.memory_space<vmem>>, vector<1x16x128xf32>
    %140 = vector.shape_cast %139 : vector<1x16x128xf32> to vector<16x128xf32>
    %cst_57 = arith.constant 7.000000e+01 : f32
    %141 = vector.broadcast %cst_57 : f32 to vector<16x128xf32>
    %142 = arith.addf %133, %141 : vector<16x128xf32>
    %143 = arith.addf %142, %131 : vector<16x128xf32>
    %cst_58 = arith.constant -5.500000e+01 : f32
    %144 = vector.broadcast %cst_58 : f32 to vector<16x128xf32>
    %145 = arith.subf %133, %144 : vector<16x128xf32>
    %cst_59 = arith.constant 1.000000e-01 : f32
    %146 = vector.broadcast %cst_59 : f32 to vector<16x128xf32>
    %147 = arith.mulf %145, %146 : vector<16x128xf32>
    %148 = math.exp %147 : vector<16x128xf32>
    %cst_60 = arith.constant 0.899999976 : f32
    %149 = vector.broadcast %cst_60 : f32 to vector<16x128xf32>
    %150 = arith.mulf %149, %133 : vector<16x128xf32>
    %cst_61 = arith.constant -7.000000e+00 : f32
    %151 = vector.broadcast %cst_61 : f32 to vector<16x128xf32>
    %152 = arith.addf %150, %151 : vector<16x128xf32>
    %153 = arith.subf %140, %143 : vector<16x128xf32>
    %cst_62 = arith.constant 1.000000e-01 : f32
    %154 = vector.broadcast %cst_62 : f32 to vector<16x128xf32>
    %155 = arith.mulf %154, %153 : vector<16x128xf32>
    %156 = arith.addf %152, %155 : vector<16x128xf32>
    %157 = arith.addf %156, %148 : vector<16x128xf32>
    %cst_63 = arith.constant -5.500000e+01 : f32
    %158 = vector.broadcast %cst_63 : f32 to vector<16x128xf32>
    %159 = arith.cmpf oge, %157, %158 : vector<16x128xf32>
    %160 = arith.extui %159 : vector<16x128xi1> to vector<16x128xi32>
    %161 = arith.sitofp %160 : vector<16x128xi32> to vector<16x128xf32>
    %162 = arith.addf %131, %161 : vector<16x128xf32>
    %cst_64 = arith.constant -7.000000e+01 : f32
    %163 = vector.broadcast %cst_64 : f32 to vector<16x128xf32>
    %164 = arith.select %159, %163, %157 : vector<16x128xi1>, vector<16x128xf32>
    %cst_65 = arith.constant 0.904837429 : f32
    %165 = vector.broadcast %cst_65 : f32 to vector<16x128xf32>
    %166 = arith.mulf %136, %165 : vector<16x128xf32>
    %167 = arith.addf %166, %161 : vector<16x128xf32>
    %c5_i32 = arith.constant 5 : i32
    %168 = arith.addi %12, %c5_i32 : i32
    %169 = arith.index_cast %168 : i32 to index
    %c0_66 = arith.constant 0 : index
    %c0_67 = arith.constant 0 : index
    %170 = vector.load %arg1[%169, %c0_66, %c0_67] : memref<8x16x128xf32, #tpu.memory_space<vmem>>, vector<1x16x128xf32>
    %171 = vector.shape_cast %170 : vector<1x16x128xf32> to vector<16x128xf32>
    %cst_68 = arith.constant 7.000000e+01 : f32
    %172 = vector.broadcast %cst_68 : f32 to vector<16x128xf32>
    %173 = arith.addf %164, %172 : vector<16x128xf32>
    %174 = arith.addf %173, %162 : vector<16x128xf32>
    %cst_69 = arith.constant -5.500000e+01 : f32
    %175 = vector.broadcast %cst_69 : f32 to vector<16x128xf32>
    %176 = arith.subf %164, %175 : vector<16x128xf32>
    %cst_70 = arith.constant 1.000000e-01 : f32
    %177 = vector.broadcast %cst_70 : f32 to vector<16x128xf32>
    %178 = arith.mulf %176, %177 : vector<16x128xf32>
    %179 = math.exp %178 : vector<16x128xf32>
    %cst_71 = arith.constant 0.899999976 : f32
    %180 = vector.broadcast %cst_71 : f32 to vector<16x128xf32>
    %181 = arith.mulf %180, %164 : vector<16x128xf32>
    %cst_72 = arith.constant -7.000000e+00 : f32
    %182 = vector.broadcast %cst_72 : f32 to vector<16x128xf32>
    %183 = arith.addf %181, %182 : vector<16x128xf32>
    %184 = arith.subf %171, %174 : vector<16x128xf32>
    %cst_73 = arith.constant 1.000000e-01 : f32
    %185 = vector.broadcast %cst_73 : f32 to vector<16x128xf32>
    %186 = arith.mulf %185, %184 : vector<16x128xf32>
    %187 = arith.addf %183, %186 : vector<16x128xf32>
    %188 = arith.addf %187, %179 : vector<16x128xf32>
    %cst_74 = arith.constant -5.500000e+01 : f32
    %189 = vector.broadcast %cst_74 : f32 to vector<16x128xf32>
    %190 = arith.cmpf oge, %188, %189 : vector<16x128xf32>
    %191 = arith.extui %190 : vector<16x128xi1> to vector<16x128xi32>
    %192 = arith.sitofp %191 : vector<16x128xi32> to vector<16x128xf32>
    %193 = arith.addf %162, %192 : vector<16x128xf32>
    %cst_75 = arith.constant -7.000000e+01 : f32
    %194 = vector.broadcast %cst_75 : f32 to vector<16x128xf32>
    %195 = arith.select %190, %194, %188 : vector<16x128xi1>, vector<16x128xf32>
    %cst_76 = arith.constant 0.904837429 : f32
    %196 = vector.broadcast %cst_76 : f32 to vector<16x128xf32>
    %197 = arith.mulf %167, %196 : vector<16x128xf32>
    %198 = arith.addf %197, %192 : vector<16x128xf32>
    %c6_i32 = arith.constant 6 : i32
    %199 = arith.addi %12, %c6_i32 : i32
    %200 = arith.index_cast %199 : i32 to index
    %c0_77 = arith.constant 0 : index
    %c0_78 = arith.constant 0 : index
    %201 = vector.load %arg1[%200, %c0_77, %c0_78] : memref<8x16x128xf32, #tpu.memory_space<vmem>>, vector<1x16x128xf32>
    %202 = vector.shape_cast %201 : vector<1x16x128xf32> to vector<16x128xf32>
    %cst_79 = arith.constant 7.000000e+01 : f32
    %203 = vector.broadcast %cst_79 : f32 to vector<16x128xf32>
    %204 = arith.addf %195, %203 : vector<16x128xf32>
    %205 = arith.addf %204, %193 : vector<16x128xf32>
    %cst_80 = arith.constant -5.500000e+01 : f32
    %206 = vector.broadcast %cst_80 : f32 to vector<16x128xf32>
    %207 = arith.subf %195, %206 : vector<16x128xf32>
    %cst_81 = arith.constant 1.000000e-01 : f32
    %208 = vector.broadcast %cst_81 : f32 to vector<16x128xf32>
    %209 = arith.mulf %207, %208 : vector<16x128xf32>
    %210 = math.exp %209 : vector<16x128xf32>
    %cst_82 = arith.constant 0.899999976 : f32
    %211 = vector.broadcast %cst_82 : f32 to vector<16x128xf32>
    %212 = arith.mulf %211, %195 : vector<16x128xf32>
    %cst_83 = arith.constant -7.000000e+00 : f32
    %213 = vector.broadcast %cst_83 : f32 to vector<16x128xf32>
    %214 = arith.addf %212, %213 : vector<16x128xf32>
    %215 = arith.subf %202, %205 : vector<16x128xf32>
    %cst_84 = arith.constant 1.000000e-01 : f32
    %216 = vector.broadcast %cst_84 : f32 to vector<16x128xf32>
    %217 = arith.mulf %216, %215 : vector<16x128xf32>
    %218 = arith.addf %214, %217 : vector<16x128xf32>
    %219 = arith.addf %218, %210 : vector<16x128xf32>
    %cst_85 = arith.constant -5.500000e+01 : f32
    %220 = vector.broadcast %cst_85 : f32 to vector<16x128xf32>
    %221 = arith.cmpf oge, %219, %220 : vector<16x128xf32>
    %222 = arith.extui %221 : vector<16x128xi1> to vector<16x128xi32>
    %223 = arith.sitofp %222 : vector<16x128xi32> to vector<16x128xf32>
    %224 = arith.addf %193, %223 : vector<16x128xf32>
    %cst_86 = arith.constant -7.000000e+01 : f32
    %225 = vector.broadcast %cst_86 : f32 to vector<16x128xf32>
    %226 = arith.select %221, %225, %219 : vector<16x128xi1>, vector<16x128xf32>
    %cst_87 = arith.constant 0.904837429 : f32
    %227 = vector.broadcast %cst_87 : f32 to vector<16x128xf32>
    %228 = arith.mulf %198, %227 : vector<16x128xf32>
    %229 = arith.addf %228, %223 : vector<16x128xf32>
    %c7_i32 = arith.constant 7 : i32
    %230 = arith.addi %12, %c7_i32 : i32
    %231 = arith.index_cast %230 : i32 to index
    %c0_88 = arith.constant 0 : index
    %c0_89 = arith.constant 0 : index
    %232 = vector.load %arg1[%231, %c0_88, %c0_89] : memref<8x16x128xf32, #tpu.memory_space<vmem>>, vector<1x16x128xf32>
    %233 = vector.shape_cast %232 : vector<1x16x128xf32> to vector<16x128xf32>
    %cst_90 = arith.constant 7.000000e+01 : f32
    %234 = vector.broadcast %cst_90 : f32 to vector<16x128xf32>
    %235 = arith.addf %226, %234 : vector<16x128xf32>
    %236 = arith.addf %235, %224 : vector<16x128xf32>
    %cst_91 = arith.constant -5.500000e+01 : f32
    %237 = vector.broadcast %cst_91 : f32 to vector<16x128xf32>
    %238 = arith.subf %226, %237 : vector<16x128xf32>
    %cst_92 = arith.constant 1.000000e-01 : f32
    %239 = vector.broadcast %cst_92 : f32 to vector<16x128xf32>
    %240 = arith.mulf %238, %239 : vector<16x128xf32>
    %241 = math.exp %240 : vector<16x128xf32>
    %cst_93 = arith.constant 0.899999976 : f32
    %242 = vector.broadcast %cst_93 : f32 to vector<16x128xf32>
    %243 = arith.mulf %242, %226 : vector<16x128xf32>
    %cst_94 = arith.constant -7.000000e+00 : f32
    %244 = vector.broadcast %cst_94 : f32 to vector<16x128xf32>
    %245 = arith.addf %243, %244 : vector<16x128xf32>
    %246 = arith.subf %233, %236 : vector<16x128xf32>
    %cst_95 = arith.constant 1.000000e-01 : f32
    %247 = vector.broadcast %cst_95 : f32 to vector<16x128xf32>
    %248 = arith.mulf %247, %246 : vector<16x128xf32>
    %249 = arith.addf %245, %248 : vector<16x128xf32>
    %250 = arith.addf %249, %241 : vector<16x128xf32>
    %cst_96 = arith.constant -5.500000e+01 : f32
    %251 = vector.broadcast %cst_96 : f32 to vector<16x128xf32>
    %252 = arith.cmpf oge, %250, %251 : vector<16x128xf32>
    %253 = arith.extui %252 : vector<16x128xi1> to vector<16x128xi32>
    %254 = arith.sitofp %253 : vector<16x128xi32> to vector<16x128xf32>
    %255 = arith.addf %224, %254 : vector<16x128xf32>
    %cst_97 = arith.constant -7.000000e+01 : f32
    %256 = vector.broadcast %cst_97 : f32 to vector<16x128xf32>
    %257 = arith.select %252, %256, %250 : vector<16x128xi1>, vector<16x128xf32>
    %cst_98 = arith.constant 0.904837429 : f32
    %258 = vector.broadcast %cst_98 : f32 to vector<16x128xf32>
    %259 = arith.mulf %229, %258 : vector<16x128xf32>
    %260 = arith.addf %259, %254 : vector<16x128xf32>
    %c1_i32_99 = arith.constant 1 : i32
    %c0_100 = arith.constant 0 : index
    %c0_101 = arith.constant 0 : index
    %c0_102 = arith.constant 0 : index
    %261 = vector.load %arg5[%c0_100, %c0_101, %c0_102] : memref<4x16x128xf32, #tpu.memory_space<vmem>>, vector<1x16x128xf32>
    %262 = vector.shape_cast %261 : vector<1x16x128xf32> to vector<16x128xf32>
    %263 = vector.shape_cast %257 : vector<16x128xf32> to vector<1x16x128xf32>
    tpu.vector_store %arg5[%c0_100, %c0_101, %c0_102], %263 {strides = array<i32>} : memref<4x16x128xf32, #tpu.memory_space<vmem>>, vector<1x16x128xf32>,
    %c1_103 = arith.constant 1 : index
    %c0_104 = arith.constant 0 : index
    %c0_105 = arith.constant 0 : index
    %264 = vector.load %arg5[%c1_103, %c0_104, %c0_105] : memref<4x16x128xf32, #tpu.memory_space<vmem>>, vector<1x16x128xf32>
    %265 = vector.shape_cast %264 : vector<1x16x128xf32> to vector<16x128xf32>
    %266 = vector.shape_cast %236 : vector<16x128xf32> to vector<1x16x128xf32>
    tpu.vector_store %arg5[%c1_103, %c0_104, %c0_105], %266 {strides = array<i32>} : memref<4x16x128xf32, #tpu.memory_space<vmem>>, vector<1x16x128xf32>,
    %c2_106 = arith.constant 2 : index
    %c0_107 = arith.constant 0 : index
    %c0_108 = arith.constant 0 : index
    %267 = vector.load %arg5[%c2_106, %c0_107, %c0_108] : memref<4x16x128xf32, #tpu.memory_space<vmem>>, vector<1x16x128xf32>
    %268 = vector.shape_cast %267 : vector<1x16x128xf32> to vector<16x128xf32>
    %269 = vector.shape_cast %255 : vector<16x128xf32> to vector<1x16x128xf32>
    tpu.vector_store %arg5[%c2_106, %c0_107, %c0_108], %269 {strides = array<i32>} : memref<4x16x128xf32, #tpu.memory_space<vmem>>, vector<1x16x128xf32>,
    %c3_109 = arith.constant 3 : index
    %c0_110 = arith.constant 0 : index
    %c0_111 = arith.constant 0 : index
    %270 = vector.load %arg5[%c3_109, %c0_110, %c0_111] : memref<4x16x128xf32, #tpu.memory_space<vmem>>, vector<1x16x128xf32>
    %271 = vector.shape_cast %270 : vector<1x16x128xf32> to vector<16x128xf32>
    %272 = vector.shape_cast %260 : vector<16x128xf32> to vector<1x16x128xf32>
    tpu.vector_store %arg5[%c3_109, %c0_110, %c0_111], %272 {strides = array<i32>} : memref<4x16x128xf32, #tpu.memory_space<vmem>>, vector<1x16x128xf32>,
    %c1_i32_112 = arith.constant 1 : i32
    %273 = arith.cmpi eq, %arg0, %c1_i32_112 : i32
    %274 = arith.extui %273 : i1 to i32
    %c0_i32_113 = arith.constant 0 : i32
    %275 = arith.cmpi ne, %274, %c0_i32_113 : i32
    scf.if %275 {
      %c0_114 = arith.constant 0 : index
      %c0_115 = arith.constant 0 : index
      %c0_116 = arith.constant 0 : index
      %276 = vector.load %arg3[%c0_114, %c0_115, %c0_116] : memref<4x16x128xf32, #tpu.memory_space<vmem>>, vector<1x16x128xf32>
      %277 = vector.shape_cast %276 : vector<1x16x128xf32> to vector<16x128xf32>
      %278 = vector.shape_cast %257 : vector<16x128xf32> to vector<1x16x128xf32>
      tpu.vector_store %arg3[%c0_114, %c0_115, %c0_116], %278 {strides = array<i32>} : memref<4x16x128xf32, #tpu.memory_space<vmem>>, vector<1x16x128xf32>,
      %c1_117 = arith.constant 1 : index
      %c0_118 = arith.constant 0 : index
      %c0_119 = arith.constant 0 : index
      %279 = vector.load %arg3[%c1_117, %c0_118, %c0_119] : memref<4x16x128xf32, #tpu.memory_space<vmem>>, vector<1x16x128xf32>
      %280 = vector.shape_cast %279 : vector<1x16x128xf32> to vector<16x128xf32>
      %281 = vector.shape_cast %236 : vector<16x128xf32> to vector<1x16x128xf32>
      tpu.vector_store %arg3[%c1_117, %c0_118, %c0_119], %281 {strides = array<i32>} : memref<4x16x128xf32, #tpu.memory_space<vmem>>, vector<1x16x128xf32>,
      %c2_120 = arith.constant 2 : index
      %c0_121 = arith.constant 0 : index
      %c0_122 = arith.constant 0 : index
      %282 = vector.load %arg3[%c2_120, %c0_121, %c0_122] : memref<4x16x128xf32, #tpu.memory_space<vmem>>, vector<1x16x128xf32>
      %283 = vector.shape_cast %282 : vector<1x16x128xf32> to vector<16x128xf32>
      %284 = vector.shape_cast %255 : vector<16x128xf32> to vector<1x16x128xf32>
      tpu.vector_store %arg3[%c2_120, %c0_121, %c0_122], %284 {strides = array<i32>} : memref<4x16x128xf32, #tpu.memory_space<vmem>>, vector<1x16x128xf32>,
      %c3_123 = arith.constant 3 : index
      %c0_124 = arith.constant 0 : index
      %c0_125 = arith.constant 0 : index
      %285 = vector.load %arg3[%c3_123, %c0_124, %c0_125] : memref<4x16x128xf32, #tpu.memory_space<vmem>>, vector<1x16x128xf32>
      %286 = vector.shape_cast %285 : vector<1x16x128xf32> to vector<16x128xf32>
      %287 = vector.shape_cast %260 : vector<16x128xf32> to vector<1x16x128xf32>
      tpu.vector_store %arg3[%c3_123, %c0_124, %c0_125], %287 {strides = array<i32>} : memref<4x16x128xf32, #tpu.memory_space<vmem>>, vector<1x16x128xf32>,
      %c0_126 = arith.constant 0 : index
      %c0_127 = arith.constant 0 : index
      %288 = vector.load %arg4[%c0_126, %c0_127] : memref<16x128xf32, #tpu.memory_space<vmem>>, vector<16x128xf32>
      tpu.vector_store %arg4[%c0_126, %c0_127], %254 {strides = array<i32>} : memref<16x128xf32, #tpu.memory_space<vmem>>, vector<16x128xf32>,
    } else {
    }
    return
  }
  func.func @transform_0(%arg0: i32) -> (i32, i32, i32) {
    %c0_i32 = arith.constant 0 : i32
    %c0_i32_0 = arith.constant 0 : i32
    %c0_i32_1 = arith.constant 0 : i32
    return %arg0, %c0_i32, %c0_i32_0 : i32, i32, i32
  }
  func.func @transform_1(%arg0: i32) -> (i32, i32, i32) {
    %c0_i32 = arith.constant 0 : i32
    %c0_i32_0 = arith.constant 0 : i32
    %c0_i32_1 = arith.constant 0 : i32
    %c0_i32_2 = arith.constant 0 : i32
    return %c0_i32, %c0_i32_0, %c0_i32_1 : i32, i32, i32
  }
  func.func @transform_2(%arg0: i32) -> (i32, i32, i32) {
    %c0_i32 = arith.constant 0 : i32
    %c0_i32_0 = arith.constant 0 : i32
    %c0_i32_1 = arith.constant 0 : i32
    %c0_i32_2 = arith.constant 0 : i32
    return %c0_i32, %c0_i32_0, %c0_i32_1 : i32, i32, i32
  }
  func.func @transform_3(%arg0: i32) -> (i32, i32) {
    %c0_i32 = arith.constant 0 : i32
    %c0_i32_0 = arith.constant 0 : i32
    %c0_i32_1 = arith.constant 0 : i32
    return %c0_i32, %c0_i32_0 : i32, i32
  }
}

</mosaic_0001>

<llo_original>
// kernel: aelif_run.1
$region0: #{aelif_run.1}
  #allocation0 [shape = 'u32[]', space=smem, size = 0x4, offset = 0x4, fixed_abs, tag = 'smem constant byte address 0x4 - core index']
  #allocation1 [shape = 'u32[72,128]{1,0:T(1,128)}', space=vmem, size = 0x9000, scoped, tag = 'internal scratch']
  #allocation2 [shape = 'f32[4,16,128]{2,1,0:T(8,128)}', space=vmem, size = 0x8000, scoped, tag = 'scratch operand']
  %s0 = inlined_call_operand.hbm [shape: f32[16,16,128], index: 0, kind: input, shape index: {}]
  %s1 = inlined_call_operand.hbm [shape: f32[4,16,128], index: 1, kind: input, shape index: {}, may-alias: {1,2}]
  %s2 = inlined_call_operand.hbm [shape: f32[4,16,128], index: 2, kind: output, shape index: {0}, may-alias: {1,2}]
  %s3 = inlined_call_operand.hbm [shape: f32[16,128], index: 3, kind: output, shape index: {1}]
  %4 = xla_tuple %s2, %s3
  %s5 = sld [smem:[#allocation0]]
  $region65: #{aelif_run.1} parent=0
    _
  %s7 = ssub.s32 1, %s5
  %s8 = scalar_select 0, %s7, %s5
  $region1: #{aelif_run.1} parent=0
    #allocation3 [shape = 'u8[131072]{0}', space=vmem, size = 0x20000, scoped, tag = 'input window, operand 0']
    #allocation4 [shape = 's32[2]{0}', space=sflag, size = 0x8, scoped, tag = 'scoped memory for aelif_run.1']
    #allocation5 [shape = 's32[2]{0}', space=sflag, size = 0x8, scoped, tag = 'scoped memory for aelif_run.1']
    #allocation6 [shape = 'u8[32768]{0}', space=vmem, size = 0x8000, scoped, tag = 'input window, operand 1, single buffered']
    #allocation7 [shape = 's32[1]{0}', space=sflag, size = 0x4, scoped, tag = 'scoped memory for aelif_run.1']
    #allocation8 [shape = 'u8[32768]{0}', space=vmem, size = 0x8000, scoped, tag = 'output window, operand 0, single buffered']
    #allocation9 [shape = 'u8[8192]{0}', space=vmem, size = 0x2000, scoped, tag = 'output window, operand 1, single buffered']
    #allocation10 [shape = 's32[1]{0}', space=sflag, size = 0x4, scoped, tag = 'scoped memory for aelif_run.1']
    %9 = vsyncpa [#allocation4], 0
    %s10 = scalar_lea.sflag [#allocation4], 1
    %11 = vsyncpa %s10, 0
    %12 = vsyncpa [#allocation7], 0
    %13 = vsyncpa [#allocation5], 0
    %14 = vsyncpa [#allocation10], 0
    loop: start=0, step=1, limit=4
    $region2: #{aelif_run.1} parent=1 // loop_pre_header
      _
    $region3: #{aelif_run.1} parent=1 // loop_header
      %s16 = sphi 0, %s20
      %p17 = scmp.ge.s32.totalorder %s16, 4
      %s26 = sphi 0, %s28
      %s29 = sphi 0, %s26
      %s30 = sphi 0, %s29
      %s46 = sphi 0, %s30
      %s50 = sphi 0, %s50
      %s52 = sphi 0, %s50
      %s53 = sphi 0, %s52
      %s67 = sphi 0, %s53
      %s71 = sphi 0, %s71
      %s73 = sphi 0, %s71
      %s74 = sphi 0, %s73
      %s88 = sphi 0, %s74
      %s92 = sphi 0, %s92
      %s94 = sphi 0, %s92
      %s95 = sphi 0, %s94
      %s109 = sphi 0, %s95
    $region4: #{aelif_run.1} parent=1 // loop_header_branch
      %19 = sbr.rel (%p17) target = $region8
    $region5: #{aelif_run.1} parent=1 // loop_body
      %s21 = ssub.s32 %s16, 1
      %s22 = ssub.s32 %s16, 2
      %s23 = sadd.s32 %s16, 1
      %s24 = ssub.s32 %s16, %s23
      %p25 = scmp.eq.s32.totalorder %s24, 0
      %s27 = sadd.s32 %s26, 1
      %s28 = scalar_select %p25, %s26, %s27
      %p31 = pneg %p25
      %p32 = scmp.eq.s32.totalorder %s16, 1
      %p33 = por %p31, %p32
      %p34 = scmp.ne.s32.totalorder %s26, %s29
      %p35 = scmp.eq.s32.totalorder %s16, 0
      %p36 = por %p34, %p35
      %p37 = scmp.ne.s32.totalorder %s26, %s29
      %p38 = scmp.eq.s32.totalorder %s21, 1
      %p39 = por %p37, %p38
      %p40 = scmp.ne.s32.totalorder %s29, %s30
      %p41 = scmp.eq.s32.totalorder %s21, 0
      %p42 = por %p40, %p41
      %p43 = scmp.ne.s32.totalorder %s29, %s30
      %p44 = scmp.eq.s32.totalorder %s22, 1
      %p45 = por %p43, %p44
      %p47 = scmp.ne.s32.totalorder %s30, %s46
      %p48 = scmp.eq.s32.totalorder %s22, 0
      %p49 = por %p47, %p48
      %s51 = sadd.s32 %s50, 1
      %p54 = scmp.eq.s32.totalorder %s16, 1
      %p55 = scmp.ne.s32.totalorder %s50, %s52
      %p56 = scmp.eq.s32.totalorder %s16, 0
      %p57 = por %p55, %p56
      %p58 = scmp.ne.s32.totalorder %s50, %s52
      %p59 = scmp.eq.s32.totalorder %s21, 1
      %p60 = por %p58, %p59
      %p61 = scmp.ne.s32.totalorder %s52, %s53
      %p62 = scmp.eq.s32.totalorder %s21, 0
      %p63 = por %p61, %p62
      %p64 = scmp.ne.s32.totalorder %s52, %s53
      %p65 = scmp.eq.s32.totalorder %s22, 1
      %p66 = por %p64, %p65
      %p68 = scmp.ne.s32.totalorder %s53, %s67
      %p69 = scmp.eq.s32.totalorder %s22, 0
      %p70 = por %p68, %p69
      %s72 = sadd.s32 %s71, 1
      %p75 = scmp.eq.s32.totalorder %s16, 1
      %p76 = scmp.ne.s32.totalorder %s71, %s73
      %p77 = scmp.eq.s32.totalorder %s16, 0
      %p78 = por %p76, %p77
      %p79 = scmp.ne.s32.totalorder %s71, %s73
      %p80 = scmp.eq.s32.totalorder %s21, 1
      %p81 = por %p79, %p80
      %p82 = scmp.ne.s32.totalorder %s73, %s74
      %p83 = scmp.eq.s32.totalorder %s21, 0
      %p84 = por %p82, %p83
      %p85 = scmp.ne.s32.totalorder %s73, %s74
      %p86 = scmp.eq.s32.totalorder %s22, 1
      %p87 = por %p85, %p86
      %p89 = scmp.ne.s32.totalorder %s74, %s88
      %p90 = scmp.eq.s32.totalorder %s22, 0
      %p91 = por %p89, %p90
      %s93 = sadd.s32 %s92, 1
      %p96 = scmp.eq.s32.totalorder %s16, 1
      %p97 = scmp.ne.s32.totalorder %s92, %s94
      %p98 = scmp.eq.s32.totalorder %s16, 0
      %p99 = por %p97, %p98
      %p100 = scmp.ne.s32.totalorder %s92, %s94
      %p101 = scmp.eq.s32.totalorder %s21, 1
      %p102 = por %p100, %p101
      %p103 = scmp.ne.s32.totalorder %s94, %s95
      %p104 = scmp.eq.s32.totalorder %s21, 0
      %p105 = por %p103, %p104
      %p106 = scmp.ne.s32.totalorder %s94, %s95
      %p107 = scmp.eq.s32.totalorder %s22, 1
      %p108 = por %p106, %p107
      %p110 = scmp.ne.s32.totalorder %s95, %s109
      %p111 = scmp.eq.s32.totalorder %s22, 0
      %p112 = por %p110, %p111
      %p113 = scmp.le.s32.totalorder 1, %s16
      %p114 = scmp.lt.s32.totalorder %s16, 3
      %p115 = pnand %p113, %p114
      %p116 = pneg %p115
      // Predicated region
      $region9: #{aelif_run.1} parent=5 // pred_check
        _
      $region10: #{aelif_run.1} parent=5 // pred_check_branch
        %118 = sbr.rel (%p115) target = $region12
      $region11: #{aelif_run.1} parent=5 // pred_region
        %s119 = ssub.s32 %s16, 1
        // Predicated region
        $region13: #{aelif_run.1} parent=11 // pred_check
          %p120 = pneg %p63
        $region14: #{aelif_run.1} parent=11 // pred_check_branch
          %122 = sbr.rel (%p120) target = $region16
        $region15: #{aelif_run.1} parent=11 // pred_region
          %124 = vsyncadd [#allocation7], 0
          %s125 = sshll.u32 %s1, 4
          %s126 = int_to_ptr.hbm [resolvable:$true] %s125
          %s127 = sshll.u32 [#allocation6], 4
          %s128 = int_to_ptr.vmem [resolvable:$true] %s127
          %133 = dma.hbm_to_vmem [thread:$0]  %s126, 1024, %s128, [#allocation7], 128, 128, 8
        $region16: #{aelif_run.1} parent=11 // pred_fallthru
          _
      $region12: #{aelif_run.1} parent=5 // pred_fallthru
        _
      %p134 = scmp.lt.s32.totalorder %s16, 2
      // Predicated region
      $region17: #{aelif_run.1} parent=5 // pred_check
        %p135 = pneg %p134
      $region18: #{aelif_run.1} parent=5 // pred_check_branch
        %137 = sbr.rel (%p135) target = $region20
      $region19: #{aelif_run.1} parent=5 // pred_region
        // Predicated region
        $region21: #{aelif_run.1} parent=19 // pred_check
          %p138 = pneg %p36
        $region22: #{aelif_run.1} parent=19 // pred_check_branch
          %140 = sbr.rel (%p138) target = $region24
        $region23: #{aelif_run.1} parent=19 // pred_region
          %s141 = sand.u32 %s26, 1
          %s142 = scalar_lea.sflag [#allocation4], %s141
          %s143 = sand.u32 %s26, 1
          %s144 = smul.addr %s143, 128
          %s145 = scalar_lea.vmem [#allocation3], %s144
          %s146 = smul.u32 8, %s16
          %148 = vsyncadd %s142, 0
          %s149 = smul.addr %s146, 2
          %s150 = smul.addr %s149, 8
          %s151 = scalar_lea.hbm %s0, %s150
          %s152 = sshll.u32 %s151, 4
          %s153 = int_to_ptr.hbm [resolvable:$true] %s152
          %s154 = sshll.u32 %s145, 4
          %s155 = int_to_ptr.vmem [resolvable:$true] %s154
          %160 = dma.hbm_to_vmem [thread:$0]  %s153, 2048, %s155, %s142, 128, 128, 8
        $region24: #{aelif_run.1} parent=19 // pred_fallthru
          _
      $region20: #{aelif_run.1} parent=5 // pred_fallthru
        _
      %p161 = scmp.le.s32.totalorder 1, %s16
      %p162 = scmp.lt.s32.totalorder %s16, 3
      %p163 = pnand %p161, %p162
      %p164 = pneg %p163
      // Predicated region
      $region25: #{aelif_run.1} parent=5 // pred_check
        _
      $region26: #{aelif_run.1} parent=5 // pred_check_branch
        %166 = sbr.rel (%p163) target = $region28
      $region27: #{aelif_run.1} parent=5 // pred_region
        %s167 = ssub.s32 %s16, 1
        %s168 = sand.u32 %s29, 1
        %s169 = scalar_lea.sflag [#allocation4], %s168
        %s170 = sand.u32 %s29, 1
        %s171 = smul.addr %s170, 128
        %s172 = scalar_lea.vmem [#allocation3], %s171
        // Predicated region
        $region29: #{aelif_run.1} parent=27 // pred_check
          %p173 = pneg %p42
        $region30: #{aelif_run.1} parent=27 // pred_check_branch
          %175 = sbr.rel (%p173) target = $region32
        $region31: #{aelif_run.1} parent=27 // pred_region
          %177 = dma.done %s169, 2048
        $region32: #{aelif_run.1} parent=27 // pred_fallthru
          _
        // Predicated region
        $region33: #{aelif_run.1} parent=27 // pred_check
          %p178 = pneg %p63
        $region34: #{aelif_run.1} parent=27 // pred_check_branch
          %180 = sbr.rel (%p178) target = $region36
        $region35: #{aelif_run.1} parent=27 // pred_region
          %182 = dma.done [#allocation7], 1024
        $region36: #{aelif_run.1} parent=27 // pred_fallthru
          _
        %s183 = sand.u32 %s29, 1
        %s184 = scalar_lea.sflag [#allocation4], %s183
        %s185 = sand.u32 %s29, 1
        %s186 = smul.addr %s185, 128
        %s187 = scalar_lea.vmem [#allocation3], %s186
        %p188 = pneg %p42
        %p189 = pneg %p39
        %p190 = pneg %p63
        %p191 = pneg %p60
        %p192 = pneg %p84
        %p193 = pneg %p81
        %p194 = pneg %p105
        %p195 = pneg %p102
        %s196 = smul.u32 8, %s21
        %p197 = scmp.eq.s32.totalorder %s21, 0
        // Predicated region
        $region37: #{aelif_run.1} parent=27 // pred_check
          %p198 = pneg %p197
        $region38: #{aelif_run.1} parent=27 // pred_check_branch
          %200 = sbr.rel (%p198) target = $region40
        $region39: #{aelif_run.1} parent=27 // pred_region
          %v201 = vld [vmem:[#allocation6] sm:$0xff]
          %v202 = vld [vmem:[#allocation6 + $0x8] sm:$0xff]
          %v203 = vld [vmem:[#allocation6 + $0x10] sm:$0xff]
          %v204 = vld [vmem:[#allocation6 + $0x18] sm:$0xff]
          %v205 = vld [vmem:[#allocation6 + $0x20] sm:$0xff]
          %v206 = vld [vmem:[#allocation6 + $0x28] sm:$0xff]
          %v207 = vld [vmem:[#allocation6 + $0x30] sm:$0xff]
          %v208 = vld [vmem:[#allocation6 + $0x38] sm:$0xff]
          %209 = vst [vmem:[#allocation2] sm:$0xff] %v201
          %210 = vst [vmem:[#allocation2 + $0x8] sm:$0xff] %v202
          %211 = vst [vmem:[#allocation2 + $0x10] sm:$0xff] %v203
          %212 = vst [vmem:[#allocation2 + $0x18] sm:$0xff] %v204
          %213 = vst [vmem:[#allocation2 + $0x20] sm:$0xff] %v205
          %214 = vst [vmem:[#allocation2 + $0x28] sm:$0xff] %v206
          %215 = vst [vmem:[#allocation2 + $0x30] sm:$0xff] %v207
          %216 = vst [vmem:[#allocation2 + $0x38] sm:$0xff] %v208
        $region40: #{aelif_run.1} parent=27 // pred_fallthru
          _
        %v217 = vld [vmem:[#allocation2] sm:$0xff]
        %v218 = vld [vmem:[#allocation2 + $0x8] sm:$0xff]
        %s219 = scalar_lea.vmem [#allocation2], 32
        %v220 = vld [vmem:[%s219] sm:$0xff]
        %v221 = vld [vmem:[%s219 + $0x8] sm:$0xff]
        %s222 = scalar_lea.vmem [#allocation2], 48
        %v223 = vld [vmem:[%s222] sm:$0xff]
        %v224 = vld [vmem:[%s222 + $0x8] sm:$0xff]
        %v225 = vld [vmem:[%s172] sm:$0xff]
        %v226 = vld [vmem:[%s172 + $0x8] sm:$0xff]
        %v227 = vadd.f32 %v217, 70.0
        %v228 = vadd.f32 %v218, 70.0
        %v229 = vadd.f32 %v227, %v220
        %v230 = vadd.f32 %v228, %v221
        %v231 = vsub.f32 %v217, -55.0
        %v232 = vsub.f32 %v218, -55.0
        %v233 = vmul.f32 %v231, 0.1
        %v234 = vmul.f32 %v232, 0.1
        %v235 = vmul.f32 %v233, 1.442695
        %v236 = vpow.pop %v235
        %v237 = vmul.f32 %v234, 1.442695
        %v238 = vpow.pop %v237
        %v239 = vmul.f32 %v217, 0.9
        %v240 = vmul.f32 %v218, 0.9
        %v241 = vadd.f32 %v239, -7.0
        %v242 = vadd.f32 %v240, -7.0
        %v243 = vsub.f32 %v225, %v229
        %v244 = vsub.f32 %v226, %v230
        %v245 = vmul.f32 %v243, 0.1
        %v246 = vmul.f32 %v244, 0.1
        %v247 = vadd.f32 %v241, %v245
        %v248 = vadd.f32 %v242, %v246
        %v249 = vadd.f32 %v247, %v236
        %v250 = vadd.f32 %v248, %v238
        %vm251 = vcmp.ge.f32.partialorder %v249, -55.0
        %vm252 = vcmp.ge.f32.partialorder %v250, -55.0
        %v253 = vsel %vm251, 1, 0
        %v254 = vsel %vm252, 1, 0
        %v255 = vcvt.s32.f32 %v253
        %v256 = vcvt.s32.f32 %v254
        %v257 = vadd.f32 %v220, %v255
        %v258 = vadd.f32 %v221, %v256
        %v259 = vsel %vm251, -70.0, %v249
        %v260 = vsel %vm252, -70.0, %v250
        %v261 = vmul.f32 %v223, 0.9048374
        %v262 = vmul.f32 %v224, 0.9048374
        %v263 = vadd.f32 %v261, %v255
        %v264 = vadd.f32 %v262, %v256
        %s265 = scalar_lea.vmem %s172, 16 [#allocation3]
        %v266 = vld [vmem:[%s265] sm:$0xff]
        %v267 = vld [vmem:[%s265 + $0x8] sm:$0xff]
        %v268 = vadd.f32 %v259, 70.0
        %v269 = vadd.f32 %v260, 70.0
        %v270 = vadd.f32 %v268, %v257
        %v271 = vadd.f32 %v269, %v258
        %v272 = vsub.f32 %v259, -55.0
        %v273 = vsub.f32 %v260, -55.0
        %v274 = vmul.f32 %v272, 0.1
        %v275 = vmul.f32 %v273, 0.1
        %v276 = vmul.f32 %v274, 1.442695
        %v277 = vpow.pop %v276
        %v278 = vmul.f32 %v275, 1.442695
        %v279 = vpow.pop %v278
        %v280 = vmul.f32 %v259, 0.9
        %v281 = vmul.f32 %v260, 0.9
        %v282 = vadd.f32 %v280, -7.0
        %v283 = vadd.f32 %v281, -7.0
        %v284 = vsub.f32 %v266, %v270
        %v285 = vsub.f32 %v267, %v271
        %v286 = vmul.f32 %v284, 0.1
        %v287 = vmul.f32 %v285, 0.1
        %v288 = vadd.f32 %v282, %v286
        %v289 = vadd.f32 %v283, %v287
        %v290 = vadd.f32 %v288, %v277
        %v291 = vadd.f32 %v289, %v279
        %vm292 = vcmp.ge.f32.partialorder %v290, -55.0
        %vm293 = vcmp.ge.f32.partialorder %v291, -55.0
        %v294 = vsel %vm292, 1, 0
        %v295 = vsel %vm293, 1, 0
        %v296 = vcvt.s32.f32 %v294
        %v297 = vcvt.s32.f32 %v295
        %v298 = vadd.f32 %v257, %v296
        %v299 = vadd.f32 %v258, %v297
        %v300 = vsel %vm292, -70.0, %v290
        %v301 = vsel %vm293, -70.0, %v291
        %v302 = vmul.f32 %v263, 0.9048374
        %v303 = vmul.f32 %v264, 0.9048374
        %v304 = vadd.f32 %v302, %v296
        %v305 = vadd.f32 %v303, %v297
        %s306 = scalar_lea.vmem %s172, 32 [#allocation3]
        %v307 = vld [vmem:[%s306] sm:$0xff]
        %v308 = vld [vmem:[%s306 + $0x8] sm:$0xff]
        %v309 = vadd.f32 %v300, 70.0
        %v310 = vadd.f32 %v301, 70.0
        %v311 = vadd.f32 %v309, %v298
        %v312 = vadd.f32 %v310, %v299
        %v313 = vsub.f32 %v300, -55.0
        %v314 = vsub.f32 %v301, -55.0
        %v315 = vmul.f32 %v313, 0.1
        %v316 = vmul.f32 %v314, 0.1
        %v317 = vmul.f32 %v315, 1.442695
        %v318 = vpow.pop %v317
        %v319 = vmul.f32 %v316, 1.442695
        %v320 = vpow.pop %v319
        %v321 = vmul.f32 %v300, 0.9
        %v322 = vmul.f32 %v301, 0.9
        %v323 = vadd.f32 %v321, -7.0
        %v324 = vadd.f32 %v322, -7.0
        %v325 = vsub.f32 %v307, %v311
        %v326 = vsub.f32 %v308, %v312
        %v327 = vmul.f32 %v325, 0.1
        %v328 = vmul.f32 %v326, 0.1
        %v329 = vadd.f32 %v323, %v327
        %v330 = vadd.f32 %v324, %v328
        %v331 = vadd.f32 %v329, %v318
        %v332 = vadd.f32 %v330, %v320
        %vm333 = vcmp.ge.f32.partialorder %v331, -55.0
        %vm334 = vcmp.ge.f32.partialorder %v332, -55.0
        %v335 = vsel %vm333, 1, 0
        %v336 = vsel %vm334, 1, 0
        %v337 = vcvt.s32.f32 %v335
        %v338 = vcvt.s32.f32 %v336
        %v339 = vadd.f32 %v298, %v337
        %v340 = vadd.f32 %v299, %v338
        %v341 = vsel %vm333, -70.0, %v331
        %v342 = vsel %vm334, -70.0, %v332
        %v343 = vmul.f32 %v304, 0.9048374
        %v344 = vmul.f32 %v305, 0.9048374
        %v345 = vadd.f32 %v343, %v337
        %v346 = vadd.f32 %v344, %v338
        %s347 = scalar_lea.vmem %s172, 48 [#allocation3]
        %v348 = vld [vmem:[%s347] sm:$0xff]
        %v349 = vld [vmem:[%s347 + $0x8] sm:$0xff]
        %v350 = vadd.f32 %v341, 70.0
        %v351 = vadd.f32 %v342, 70.0
        %v352 = vadd.f32 %v350, %v339
        %v353 = vadd.f32 %v351, %v340
        %v354 = vsub.f32 %v341, -55.0
        %v355 = vsub.f32 %v342, -55.0
        %v356 = vmul.f32 %v354, 0.1
        %v357 = vmul.f32 %v355, 0.1
        %v358 = vmul.f32 %v356, 1.442695
        %v359 = vpow.pop %v358
        %v360 = vmul.f32 %v357, 1.442695
        %v361 = vpow.pop %v360
        %v362 = vmul.f32 %v341, 0.9
        %v363 = vmul.f32 %v342, 0.9
        %v364 = vadd.f32 %v362, -7.0
        %v365 = vadd.f32 %v363, -7.0
        %v366 = vsub.f32 %v348, %v352
        %v367 = vsub.f32 %v349, %v353
        %v368 = vmul.f32 %v366, 0.1
        %v369 = vmul.f32 %v367, 0.1
        %v370 = vadd.f32 %v364, %v368
        %v371 = vadd.f32 %v365, %v369
        %v372 = vadd.f32 %v370, %v359
        %v373 = vadd.f32 %v371, %v361
        %vm374 = vcmp.ge.f32.partialorder %v372, -55.0
        %vm375 = vcmp.ge.f32.partialorder %v373, -55.0
        %v376 = vsel %vm374, 1, 0
        %v377 = vsel %vm375, 1, 0
        %v378 = vcvt.s32.f32 %v376
        %v379 = vcvt.s32.f32 %v377
        %v380 = vadd.f32 %v339, %v378
        %v381 = vadd.f32 %v340, %v379
        %v382 = vsel %vm374, -70.0, %v372
        %v383 = vsel %vm375, -70.0, %v373
        %v384 = vmul.f32 %v345, 0.9048374
        %v385 = vmul.f32 %v346, 0.9048374
        %v386 = vadd.f32 %v384, %v378
        %v387 = vadd.f32 %v385, %v379
        %s388 = scalar_lea.vmem %s172, 64 [#allocation3]
        %v389 = vld [vmem:[%s388] sm:$0xff]
        %v390 = vld [vmem:[%s388 + $0x8] sm:$0xff]
        %v391 = vadd.f32 %v382, 70.0
        %v392 = vadd.f32 %v383, 70.0
        %v393 = vadd.f32 %v391, %v380
        %v394 = vadd.f32 %v392, %v381
        %v395 = vsub.f32 %v382, -55.0
        %v396 = vsub.f32 %v383, -55.0
        %v397 = vmul.f32 %v395, 0.1
        %v398 = vmul.f32 %v396, 0.1
        %v399 = vmul.f32 %v397, 1.442695
        %v400 = vpow.pop %v399
        %v401 = vmul.f32 %v398, 1.442695
        %v402 = vpow.pop %v401
        %v403 = vmul.f32 %v382, 0.9
        %v404 = vmul.f32 %v383, 0.9
        %v405 = vadd.f32 %v403, -7.0
        %v406 = vadd.f32 %v404, -7.0
        %v407 = vsub.f32 %v389, %v393
        %v408 = vsub.f32 %v390, %v394
        %v409 = vmul.f32 %v407, 0.1
        %v410 = vmul.f32 %v408, 0.1
        %v411 = vadd.f32 %v405, %v409
        %v412 = vadd.f32 %v406, %v410
        %v413 = vadd.f32 %v411, %v400
        %v414 = vadd.f32 %v412, %v402
        %vm415 = vcmp.ge.f32.partialorder %v413, -55.0
        %vm416 = vcmp.ge.f32.partialorder %v414, -55.0
        %v417 = vsel %vm415, 1, 0
        %v418 = vsel %vm416, 1, 0
        %v419 = vcvt.s32.f32 %v417
        %v420 = vcvt.s32.f32 %v418
        %v421 = vadd.f32 %v380, %v419
        %v422 = vadd.f32 %v381, %v420
        %v423 = vsel %vm415, -70.0, %v413
        %v424 = vsel %vm416, -70.0, %v414
        %v425 = vmul.f32 %v386, 0.9048374
        %v426 = vmul.f32 %v387, 0.9048374
        %v427 = vadd.f32 %v425, %v419
        %v428 = vadd.f32 %v426, %v420
        %s429 = scalar_lea.vmem %s172, 80 [#allocation3]
        %v430 = vld [vmem:[%s429] sm:$0xff]
        %v431 = vld [vmem:[%s429 + $0x8] sm:$0xff]
        %v432 = vadd.f32 %v423, 70.0
        %v433 = vadd.f32 %v424, 70.0
        %v434 = vadd.f32 %v432, %v421
        %v435 = vadd.f32 %v433, %v422
        %v436 = vsub.f32 %v423, -55.0
        %v437 = vsub.f32 %v424, -55.0
        %v438 = vmul.f32 %v436, 0.1
        %v439 = vmul.f32 %v437, 0.1
        %v440 = vmul.f32 %v438, 1.442695
        %v441 = vpow.pop %v440
        %v442 = vmul.f32 %v439, 1.442695
        %v443 = vpow.pop %v442
        %v444 = vmul.f32 %v423, 0.9
        %v445 = vmul.f32 %v424, 0.9
        %v446 = vadd.f32 %v444, -7.0
        %v447 = vadd.f32 %v445, -7.0
        %v448 = vsub.f32 %v430, %v434
        %v449 = vsub.f32 %v431, %v435
        %v450 = vmul.f32 %v448, 0.1
        %v451 = vmul.f32 %v449, 0.1
        %v452 = vadd.f32 %v446, %v450
        %v453 = vadd.f32 %v447, %v451
        %v454 = vadd.f32 %v452, %v441
        %v455 = vadd.f32 %v453, %v443
        %vm456 = vcmp.ge.f32.partialorder %v454, -55.0
        %vm457 = vcmp.ge.f32.partialorder %v455, -55.0
        %v458 = vsel %vm456, 1, 0
        %v459 = vsel %vm457, 1, 0
        %v460 = vcvt.s32.f32 %v458
        %v461 = vcvt.s32.f32 %v459
        %v462 = vadd.f32 %v421, %v460
        %v463 = vadd.f32 %v422, %v461
        %v464 = vsel %vm456, -70.0, %v454
        %v465 = vsel %vm457, -70.0, %v455
        %v466 = vmul.f32 %v427, 0.9048374
        %v467 = vmul.f32 %v428, 0.9048374
        %v468 = vadd.f32 %v466, %v460
        %v469 = vadd.f32 %v467, %v461
        %s470 = scalar_lea.vmem %s172, 96 [#allocation3]
        %v471 = vld [vmem:[%s470] sm:$0xff]
        %v472 = vld [vmem:[%s470 + $0x8] sm:$0xff]
        %v473 = vadd.f32 %v464, 70.0
        %v474 = vadd.f32 %v465, 70.0
        %v475 = vadd.f32 %v473, %v462
        %v476 = vadd.f32 %v474, %v463
        %v477 = vsub.f32 %v464, -55.0
        %v478 = vsub.f32 %v465, -55.0
        %v479 = vmul.f32 %v477, 0.1
        %v480 = vmul.f32 %v478, 0.1
        %v481 = vmul.f32 %v479, 1.442695
        %v482 = vpow.pop %v481
        %v483 = vmul.f32 %v480, 1.442695
        %v484 = vpow.pop %v483
        %v485 = vmul.f32 %v464, 0.9
        %v486 = vmul.f32 %v465, 0.9
        %v487 = vadd.f32 %v485, -7.0
        %v488 = vadd.f32 %v486, -7.0
        %v489 = vsub.f32 %v471, %v475
        %v490 = vsub.f32 %v472, %v476
        %v491 = vmul.f32 %v489, 0.1
        %v492 = vmul.f32 %v490, 0.1
        %v493 = vadd.f32 %v487, %v491
        %v494 = vadd.f32 %v488, %v492
        %v495 = vadd.f32 %v493, %v482
        %v496 = vadd.f32 %v494, %v484
        %vm497 = vcmp.ge.f32.partialorder %v495, -55.0
        %vm498 = vcmp.ge.f32.partialorder %v496, -55.0
        %v499 = vsel %vm497, 1, 0
        %v500 = vsel %vm498, 1, 0
        %v501 = vcvt.s32.f32 %v499
        %v502 = vcvt.s32.f32 %v500
        %v503 = vadd.f32 %v462, %v501
        %v504 = vadd.f32 %v463, %v502
        %v505 = vsel %vm497, -70.0, %v495
        %v506 = vsel %vm498, -70.0, %v496
        %v507 = vmul.f32 %v468, 0.9048374
        %v508 = vmul.f32 %v469, 0.9048374
        %v509 = vadd.f32 %v507, %v501
        %v510 = vadd.f32 %v508, %v502
        %s511 = scalar_lea.vmem %s172, 112 [#allocation3]
        %v512 = vld [vmem:[%s511] sm:$0xff]
        %v513 = vld [vmem:[%s511 + $0x8] sm:$0xff]
        %v514 = vadd.f32 %v505, 70.0
        %v515 = vadd.f32 %v506, 70.0
        %v516 = vadd.f32 %v514, %v503
        %v517 = vadd.f32 %v515, %v504
        %v518 = vsub.f32 %v505, -55.0
        %v519 = vsub.f32 %v506, -55.0
        %v520 = vmul.f32 %v518, 0.1
        %v521 = vmul.f32 %v519, 0.1
        %v522 = vmul.f32 %v520, 1.442695
        %v523 = vpow.pop %v522
        %v524 = vmul.f32 %v521, 1.442695
        %v525 = vpow.pop %v524
        %v526 = vmul.f32 %v505, 0.9
        %v527 = vmul.f32 %v506, 0.9
        %v528 = vadd.f32 %v526, -7.0
        %v529 = vadd.f32 %v527, -7.0
        %v530 = vsub.f32 %v512, %v516
        %v531 = vsub.f32 %v513, %v517
        %v532 = vmul.f32 %v530, 0.1
        %v533 = vmul.f32 %v531, 0.1
        %v534 = vadd.f32 %v528, %v532
        %v535 = vadd.f32 %v529, %v533
        %v536 = vadd.f32 %v534, %v523
        %v537 = vadd.f32 %v535, %v525
        %vm538 = vcmp.ge.f32.partialorder %v536, -55.0
        %vm539 = vcmp.ge.f32.partialorder %v537, -55.0
        %v540 = vsel %vm538, 1, 0
        %v541 = vsel %vm539, 1, 0
        %v542 = vcvt.s32.f32 %v540
        %v543 = vcvt.s32.f32 %v541
        %v544 = vadd.f32 %v503, %v542
        %v545 = vadd.f32 %v504, %v543
        %v546 = vsel %vm538, -70.0, %v536
        %v547 = vsel %vm539, -70.0, %v537
        %v548 = vmul.f32 %v509, 0.9048374
        %v549 = vmul.f32 %v510, 0.9048374
        %v550 = vadd.f32 %v548, %v542
        %v551 = vadd.f32 %v549, %v543
        %552 = vst [vmem:[#allocation2] sm:$0xff] %v546
        %553 = vst [vmem:[#allocation2 + $0x8] sm:$0xff] %v547
        %s554 = scalar_lea.vmem [#allocation2], 16
        %555 = vst [vmem:[%s554] sm:$0xff] %v516
        %556 = vst [vmem:[%s554 + $0x8] sm:$0xff] %v517
        %557 = vst [vmem:[%s219] sm:$0xff] %v544
        %558 = vst [vmem:[%s219 + $0x8] sm:$0xff] %v545
        %559 = vst [vmem:[%s222] sm:$0xff] %v550
        %560 = vst [vmem:[%s222 + $0x8] sm:$0xff] %v551
        %p561 = scmp.eq.s32.totalorder %s21, 1
        // Predicated region
        $region41: #{aelif_run.1} parent=27 // pred_check
          %p562 = pneg %p561
        $region42: #{aelif_run.1} parent=27 // pred_check_branch
          %564 = sbr.rel (%p562) target = $region44
        $region43: #{aelif_run.1} parent=27 // pred_region
          %565 = vst [vmem:[#allocation8] sm:$0xff] %v546
          %566 = vst [vmem:[#allocation8 + $0x8] sm:$0xff] %v547
          %s567 = scalar_lea.vmem [#allocation8], 16
          %568 = vst [vmem:[%s567] sm:$0xff] %v516
          %569 = vst [vmem:[%s567 + $0x8] sm:$0xff] %v517
          %s570 = scalar_lea.vmem [#allocation8], 32
          %571 = vst [vmem:[%s570] sm:$0xff] %v544
          %572 = vst [vmem:[%s570 + $0x8] sm:$0xff] %v545
          %s573 = scalar_lea.vmem [#allocation8], 48
          %574 = vst [vmem:[%s573] sm:$0xff] %v550
          %575 = vst [vmem:[%s573 + $0x8] sm:$0xff] %v551
          %576 = vst [vmem:[#allocation9] sm:$0xff] %v542
          %577 = vst [vmem:[#allocation9 + $0x8] sm:$0xff] %v543
        $region44: #{aelif_run.1} parent=27 // pred_fallthru
          _
        // Predicated region
        $region45: #{aelif_run.1} parent=27 // pred_check
          %p578 = pneg %p81
        $region46: #{aelif_run.1} parent=27 // pred_check_branch
          %580 = sbr.rel (%p578) target = $region48
        $region47: #{aelif_run.1} parent=27 // pred_region
          %582 = vsyncadd [#allocation5], 0
          %s583 = sshll.u32 [#allocation8], 4
          %s584 = int_to_ptr.vmem [resolvable:$true] %s583
          %s585 = sshll.u32 %s2, 4
          %s586 = int_to_ptr.hbm [resolvable:$true] %s585
          %591 = dma.vmem_to_hbm [thread:$0]  %s584, 1024, %s586, [#allocation5], 128, 128, 8
        $region48: #{aelif_run.1} parent=27 // pred_fallthru
          _
        // Predicated region
        $region49: #{aelif_run.1} parent=27 // pred_check
          %p592 = pneg %p102
        $region50: #{aelif_run.1} parent=27 // pred_check_branch
          %594 = sbr.rel (%p592) target = $region52
        $region51: #{aelif_run.1} parent=27 // pred_region
          %596 = vsyncadd [#allocation10], 0
          %s597 = sshll.u32 [#allocation9], 4
          %s598 = int_to_ptr.vmem [resolvable:$true] %s597
          %s599 = sshll.u32 %s3, 4
          %s600 = int_to_ptr.hbm [resolvable:$true] %s599
          %605 = dma.vmem_to_hbm [thread:$0]  %s598, 256, %s600, [#allocation10], 128, 128, 8
        $region52: #{aelif_run.1} parent=27 // pred_fallthru
          _
        // Predicated region
        $region53: #{aelif_run.1} parent=27 // pred_check
          %p606 = pneg %p81
        $region54: #{aelif_run.1} parent=27 // pred_check_branch
          %608 = sbr.rel (%p606) target = $region56
        $region55: #{aelif_run.1} parent=27 // pred_region
          %610 = dma.done [#allocation5], 1024
        $region56: #{aelif_run.1} parent=27 // pred_fallthru
          _
        // Predicated region
        $region57: #{aelif_run.1} parent=27 // pred_check
          %p611 = pneg %p102
        $region58: #{aelif_run.1} parent=27 // pred_check_branch
          %613 = sbr.rel (%p611) target = $region60
        $region59: #{aelif_run.1} parent=27 // pred_region
          %615 = dma.done [#allocation10], 256
        $region60: #{aelif_run.1} parent=27 // pred_fallthru
          _
      $region28: #{aelif_run.1} parent=5 // pred_fallthru
        _
      %p616 = scmp.le.s32.totalorder 2, %s16
      // Predicated region
      $region61: #{aelif_run.1} parent=5 // pred_check
        %p617 = pneg %p616
      $region62: #{aelif_run.1} parent=5 // pred_check_branch
        %619 = sbr.rel (%p617) target = $region64
      $region63: #{aelif_run.1} parent=5 // pred_region
        %s620 = ssub.s32 %s16, 2
      $region64: #{aelif_run.1} parent=5 // pred_fallthru
        _
    $region6: #{aelif_run.1} parent=1 // loop_footer
      %s20 = sadd.s32 1, %s16
    $region7: #{aelif_run.1} parent=1 // loop_footer_branch
      %15 = sbr.rel target = $region3
    $region8: #{aelif_run.1} parent=1 // loop_exit
      _
    %621 = vsyncpa [#allocation4], 1
    %s622 = scalar_lea.sflag [#allocation4], 1
    %623 = vsyncpa %s622, 1
    %624 = vsyncpa [#allocation7], 1
    %625 = vsyncpa [#allocation5], 1
    %s626 = scalar_lea.sflag [#allocation5], 1
    %627 = vsyncpa %s626, 1
    %628 = vsyncpa [#allocation10], 1

</llo_original>
